<compile_context>
chip_gen: v7x
topology: tpu7x:2x2x1
jax: 0.10.0
libtpu: 0.0.40
codegen_flags: <defaults>
</compile_context>

<pallas_src>
import jax
import jax.numpy as jnp
from jax.experimental import pallas as pl
from jax.experimental.pallas import tpu as pltpu


def _round_up(x, m):
    return ((x + m - 1) // m) * m


def _vmem_capacity_bytes():
    try:
        return int(pltpu.get_tpu_info().vmem_capacity_bytes)
    except Exception:
        return 64 << 20  # conservative fallback (v7x per-TC capacity)


def deepbid_forward_kernel(
    x_ref,
    w1_ref, b1_ref,   # enc1: (d0, h1), (1, h1)
    w2_ref, b2_ref,   # enc2: (h1, h2), (1, h2)
    w3_ref, b3_ref,   # dec1: (h2, h1), (1, h1)
    w4_ref, b4_ref,   # dec2: (h1, d0), (1, d0)
    z_out_ref,        # (tn, h2)
    recons_out_ref,   # (tn, d0)
):
    cdt = w1_ref.dtype  # matmul operand dtype (bf16 or f32); accumulation is f32
    x = x_ref[...].astype(cdt)

    # Hoist bias loads once per tile (broadcast_in_dim is not CSE'd).
    b1 = b1_ref[...]
    b2 = b2_ref[...]
    b3 = b3_ref[...]
    b4 = b4_ref[...]

    # enc1 + tanh
    h = jnp.tanh(jnp.dot(x, w1_ref[...], preferred_element_type=jnp.float32) + b1)
    # enc2 + tanh -> latent z
    z = jnp.tanh(
        jnp.dot(h.astype(cdt), w2_ref[...], preferred_element_type=jnp.float32) + b2
    )
    z_out_ref[...] = z.astype(z_out_ref.dtype)
    # dec1 + tanh
    r = jnp.tanh(
        jnp.dot(z.astype(cdt), w3_ref[...], preferred_element_type=jnp.float32) + b3
    )
    # dec2 + tanh -> reconstruction
    r = jnp.tanh(
        jnp.dot(r.astype(cdt), w4_ref[...], preferred_element_type=jnp.float32) + b4
    )
    recons_out_ref[...] = r.astype(recons_out_ref.dtype)


def deepbid_forward(x, params, *, tn=2048, compute_dtype=jnp.bfloat16, out_dtype=None):
    """DeepBID.forward.

    x: (N, d0). params: pre-transposed weights (in, out) and biases (1, out).
    compute_dtype: MXU operand dtype (bf16 default; f32 accumulation/tanh always).
    out_dtype: dtype of z / recons_x outputs (defaults to compute_dtype).
    x is read in its own dtype and cast in-kernel (no wrapper-side HBM pass);
    pass bf16 x for minimal read traffic.
    """
    N, d0 = x.shape
    compute_dtype = jnp.dtype(compute_dtype)
    out_dtype = jnp.dtype(compute_dtype if out_dtype is None else out_dtype)

    w1, b1 = params["w1"], params["b1"]   # (d0, h1), (1, h1)
    w2, b2 = params["w2"], params["b2"]   # (h1, h2), (1, h2)
    w3, b3 = params["w3"], params["b3"]   # (h2, h1), (1, h1)
    w4, b4 = params["w4"], params["b4"]   # (h1, d0), (1, d0)
    h1 = w1.shape[1]
    h2 = w2.shape[1]

    # Weights to the matmul operand dtype (tiny, fully VMEM-resident); biases f32.
    f32 = jnp.float32
    w1p = jnp.asarray(w1).astype(compute_dtype)
    w2p = jnp.asarray(w2).astype(compute_dtype)
    w3p = jnp.asarray(w3).astype(compute_dtype)
    w4p = jnp.asarray(w4).astype(compute_dtype)
    b1p = jnp.asarray(b1).astype(f32)
    b2p = jnp.asarray(b2).astype(f32)
    b3p = jnp.asarray(b3).astype(f32)
    b4p = jnp.asarray(b4).astype(f32)

    # Batch tile: large, clamped to the batch; bf16 sublane packing floor is 16.
    tn_min = 16 if compute_dtype == jnp.dtype(jnp.bfloat16) else 8
    tn = max(tn_min, min(int(tn), _round_up(N, tn_min)))
    # Keep the grid at >= 2 "parallel" steps once the batch is big enough
    # (v7x: 2 TensorCores per chip share HBM bandwidth; megacore elsewhere).
    if pl.cdiv(N, tn) < 2 and N > 2 * tn_min:
        tn = _round_up(pl.cdiv(N, 2), tn_min)
    grid = (pl.cdiv(N, tn),)

    def full(shape):
        # Replicated block (constant index_map): the pipeline does not re-DMA
        # the unchanged weight/bias block between grid steps.
        return pl.BlockSpec(shape, lambda i: (0, 0))

    # VMEM budget: (8,128)-tile-padded footprint of double-buffered I/O tiles,
    # resident weights/biases and f32 intermediates, clamped to ~85% of the
    # generation's real VMEM capacity (64 MiB on v7x, 128 MiB on v5e/v6e).
    def padded(r, c):
        return _round_up(max(r, 1), 8) * _round_up(max(c, 1), 128)

    cbytes = compute_dtype.itemsize
    xbytes = jnp.dtype(x.dtype).itemsize
    obytes = out_dtype.itemsize
    weight_vmem = (padded(d0, h1) + padded(h1, h2) + padded(h2, h1) + padded(h1, d0)) * cbytes
    bias_vmem = (2 * padded(1, h1) + padded(1, h2) + padded(1, d0)) * 4
    io_vmem = 2 * (padded(tn, d0) * xbytes + padded(tn, h2) * obytes + padded(tn, d0) * obytes)
    interm_vmem = (2 * padded(tn, h1) + padded(tn, h2) + padded(tn, d0)) * 4
    vmem_est = 2 * (weight_vmem + bias_vmem) + io_vmem + interm_vmem + (4 << 20)
    vmem_cap = _vmem_capacity_bytes()
    vmem_limit = int(min(int(vmem_cap * 0.85), max(vmem_est, 32 << 20)))

    flops = 2 * N * (d0 * h1 + h1 * h2 + h2 * h1 + h1 * d0)
    transcendentals = N * (2 * h1 + h2 + d0)
    bytes_accessed = int(
        N * d0 * xbytes
        + (d0 * h1 + h1 * h2 + h2 * h1 + h1 * d0) * cbytes
        + (2 * h1 + h2 + d0) * 4
        + N * (h2 + d0) * obytes
    )

    z, recons_x = pl.pallas_call(
        deepbid_forward_kernel,
        out_shape=(
            jax.ShapeDtypeStruct((N, h2), out_dtype),
            jax.ShapeDtypeStruct((N, d0), out_dtype),
        ),
        grid_spec=pl.GridSpec(
            grid=grid,
            in_specs=[
                pl.BlockSpec((tn, d0), lambda i: (i, 0)),    # x tile (partial last block masked)
                full((d0, h1)), full((1, h1)),               # enc1
                full((h1, h2)), full((1, h2)),               # enc2
                full((h2, h1)), full((1, h1)),               # dec1
                full((h1, d0)), full((1, d0)),               # dec2
            ],
            out_specs=(
                pl.BlockSpec((tn, h2), lambda i: (i, 0)),
                pl.BlockSpec((tn, d0), lambda i: (i, 0)),
            ),
        ),
        compiler_params=pltpu.CompilerParams(
            dimension_semantics=("parallel",),
            vmem_limit_bytes=vmem_limit,
        ),
        cost_estimate=pl.CostEstimate(
            flops=flops,
            transcendentals=transcendentals,
            bytes_accessed=bytes_accessed,
        ),
    )(x, w1p, b1p, w2p, b2p, w3p, b3p, w4p, b4p)

    return z, recons_x


def init_params(key, d0, h1, h2):
    """Synthetic init mimicking nn.Linear. Weights stored transposed (in, out)."""
    ks = jax.random.split(key, 8)

    def lin(kw, kb, fan_in, fan_out):
        bound = 1.0 / jnp.sqrt(fan_in)
        w = jax.random.uniform(kw, (fan_in, fan_out), jnp.float32, -bound, bound)
        b = jax.random.uniform(kb, (1, fan_out), jnp.float32, -bound, bound)
        return w, b

    w1, b1 = lin(ks[0], ks[1], d0, h1)   # enc1
    w2, b2 = lin(ks[2], ks[3], h1, h2)   # enc2
    w3, b3 = lin(ks[4], ks[5], h2, h1)   # dec1
    w4, b4 = lin(ks[6], ks[7], h1, d0)   # dec2
    return dict(w1=w1, b1=b1, w2=w2, b2=b2, w3=w3, b3=b3, w4=w4, b4=b4)


def deepbid_forward_ref(x, p):
    z = jnp.tanh(x @ p["w1"] + p["b1"])
    z = jnp.tanh(z @ p["w2"] + p["b2"])
    r = jnp.tanh(z @ p["w3"] + p["b3"])
    r = jnp.tanh(r @ p["w4"] + p["b4"])
    return z, r


if __name__ == "__main__":
    # Small shapes consistent with DeepBID: layers = [d0, h1, h2]
    d0, h1, h2 = 32, 64, 48
    key = jax.random.PRNGKey(0)
    kp, kx1, kx2 = jax.random.split(key, 3)
    params = init_params(kp, d0, h1, h2)

    # 1) Tiny batch, f32 operands/outputs: exact match vs. reference.
    N1 = 16
    x1 = jax.random.normal(kx1, (N1, d0), jnp.float32)
    z1, r1 = deepbid_forward(x1, params, compute_dtype=jnp.float32)
    jax.block_until_ready((z1, r1))
    z1_ref, r1_ref = deepbid_forward_ref(x1, params)
    assert z1.shape == (N1, h2) and r1.shape == (N1, d0)
    assert jnp.allclose(z1, z1_ref, atol=1e-5, rtol=1e-5)
    assert jnp.allclose(r1, r1_ref, atol=1e-5, rtol=1e-5)

    # 2) Batch not a multiple of the tile: partial last block + >= 2 grid steps, f32.
    N2 = 600
    x2 = jax.random.normal(kx2, (N2, d0), jnp.float32)
    z2, r2 = deepbid_forward(x2, params, compute_dtype=jnp.float32)
    jax.block_until_ready((z2, r2))
    z2_ref, r2_ref = deepbid_forward_ref(x2, params)
    assert z2.shape == (N2, h2) and r2.shape == (N2, d0)
    assert jnp.allclose(z2, z2_ref, atol=1e-5, rtol=1e-5)
    assert jnp.allclose(r2, r2_ref, atol=1e-5, rtol=1e-5)

    # 3) Default path: bf16 MXU operands + bf16 z/recons outputs (f32 accumulation
    #    and tanh), x passed already in bf16. Looser tolerance (accuracy trade-off).
    x2_bf16 = x2.astype(jnp.bfloat16)
    z3, r3 = deepbid_forward(x2_bf16, params)
    jax.block_until_ready((z3, r3))
    assert z3.dtype == jnp.bfloat16 and r3.dtype == jnp.bfloat16
    assert jnp.allclose(z3.astype(jnp.float32), z2_ref, atol=3e-2, rtol=3e-2)
    assert jnp.allclose(r3.astype(jnp.float32), r2_ref, atol=3e-2, rtol=3e-2)

    print("KERNEL_OK")
</pallas_src>

<mosaic_0001>
module attributes {stable_mosaic.version = 11 : i64} {
  func.func @deepbid_forward_kernel(%arg0: i32, %arg1: memref<16x32xf32, #tpu.memory_space<vmem>>, %arg2: memref<32x64xf32, #tpu.memory_space<vmem>>, %arg3: memref<1x64xf32, #tpu.memory_space<vmem>>, %arg4: memref<64x48xf32, #tpu.memory_space<vmem>>, %arg5: memref<1x48xf32, #tpu.memory_space<vmem>>, %arg6: memref<48x64xf32, #tpu.memory_space<vmem>>, %arg7: memref<1x64xf32, #tpu.memory_space<vmem>>, %arg8: memref<64x32xf32, #tpu.memory_space<vmem>>, %arg9: memref<1x32xf32, #tpu.memory_space<vmem>>, %arg10: memref<16x48xf32, #tpu.memory_space<vmem>>, %arg11: memref<16x32xf32, #tpu.memory_space<vmem>>) attributes {dimension_semantics = [#tpu.dimension_semantics<parallel>], iteration_bounds = array<i64: 1>, scalar_prefetch = 0 : i64, scratch_operands = 0 : i64, tpu.core_type = #tpu.core_type<tc>, window_params = [{transform_indices = @transform_0, window_bounds = array<i64: 16, 32>}, {pipeline_mode = #tpu.pipeline_mode<synchronous>, transform_indices = @transform_1, window_bounds = array<i64: 32, 64>}, {pipeline_mode = #tpu.pipeline_mode<synchronous>, transform_indices = @transform_2, window_bounds = array<i64: 1, 64>}, {pipeline_mode = #tpu.pipeline_mode<synchronous>, transform_indices = @transform_3, window_bounds = array<i64: 64, 48>}, {pipeline_mode = #tpu.pipeline_mode<synchronous>, transform_indices = @transform_4, window_bounds = array<i64: 1, 48>}, {pipeline_mode = #tpu.pipeline_mode<synchronous>, transform_indices = @transform_5, window_bounds = array<i64: 48, 64>}, {pipeline_mode = #tpu.pipeline_mode<synchronous>, transform_indices = @transform_6, window_bounds = array<i64: 1, 64>}, {pipeline_mode = #tpu.pipeline_mode<synchronous>, transform_indices = @transform_7, window_bounds = array<i64: 64, 32>}, {pipeline_mode = #tpu.pipeline_mode<synchronous>, transform_indices = @transform_8, window_bounds = array<i64: 1, 32>}, {transform_indices = @transform_9, window_bounds = array<i64: 16, 48>}, {transform_indices = @transform_10, window_bounds = array<i64: 16, 32>}]} {
    %c0 = arith.constant 0 : index
    %c0_0 = arith.constant 0 : index
    %0 = vector.load %arg1[%c0, %c0_0] : memref<16x32xf32, #tpu.memory_space<vmem>>, vector<16x32xf32>
    %c0_1 = arith.constant 0 : index
    %c0_2 = arith.constant 0 : index
    %1 = vector.load %arg3[%c0_1, %c0_2] : memref<1x64xf32, #tpu.memory_space<vmem>>, vector<1x64xf32>
    %c0_3 = arith.constant 0 : index
    %c0_4 = arith.constant 0 : index
    %2 = vector.load %arg5[%c0_3, %c0_4] : memref<1x48xf32, #tpu.memory_space<vmem>>, vector<1x48xf32>
    %c0_5 = arith.constant 0 : index
    %c0_6 = arith.constant 0 : index
    %3 = vector.load %arg7[%c0_5, %c0_6] : memref<1x64xf32, #tpu.memory_space<vmem>>, vector<1x64xf32>
    %c0_7 = arith.constant 0 : index
    %c0_8 = arith.constant 0 : index
    %4 = vector.load %arg9[%c0_7, %c0_8] : memref<1x32xf32, #tpu.memory_space<vmem>>, vector<1x32xf32>
    %c0_9 = arith.constant 0 : index
    %c0_10 = arith.constant 0 : index
    %5 = vector.load %arg2[%c0_9, %c0_10] : memref<32x64xf32, #tpu.memory_space<vmem>>, vector<32x64xf32>
    %cst = arith.constant dense<0.000000e+00> : vector<16x64xf32>
    %6 = tpu.matmul %0, %5, %cst {dimension_numbers = #tpu.dot_dimension_numbers<[1], [0], [0], [1], [0, 0, 1, 1], [], []>} : vector<16x32xf32>, vector<32x64xf32>, vector<16x64xf32> -> vector<16x64xf32>
    %7 = vector.broadcast %1 : vector<1x64xf32> to vector<16x64xf32>
    %8 = arith.addf %6, %7 : vector<16x64xf32>
    %9 = math.tanh %8 : vector<16x64xf32>
    %c0_11 = arith.constant 0 : index
    %c0_12 = arith.constant 0 : index
    %10 = vector.load %arg4[%c0_11, %c0_12] : memref<64x48xf32, #tpu.memory_space<vmem>>, vector<64x48xf32>
    %cst_13 = arith.constant dense<0.000000e+00> : vector<16x48xf32>
    %11 = tpu.matmul %9, %10, %cst_13 {dimension_numbers = #tpu.dot_dimension_numbers<[1], [0], [0], [1], [0, 0, 1, 1], [], []>} : vector<16x64xf32>, vector<64x48xf32>, vector<16x48xf32> -> vector<16x48xf32>
    %12 = vector.broadcast %2 : vector<1x48xf32> to vector<16x48xf32>
    %13 = arith.addf %11, %12 : vector<16x48xf32>
    %14 = math.tanh %13 : vector<16x48xf32>
    %c0_14 = arith.constant 0 : index
    %c0_15 = arith.constant 0 : index
    %15 = vector.load %arg10[%c0_14, %c0_15] : memref<16x48xf32, #tpu.memory_space<vmem>>, vector<16x48xf32>
    tpu.vector_store %arg10[%c0_14, %c0_15], %14 {strides = array<i32>} : memref<16x48xf32, #tpu.memory_space<vmem>>, vector<16x48xf32>,
    %c0_16 = arith.constant 0 : index
    %c0_17 = arith.constant 0 : index
    %16 = vector.load %arg6[%c0_16, %c0_17] : memref<48x64xf32, #tpu.memory_space<vmem>>, vector<48x64xf32>
    %cst_18 = arith.constant dense<0.000000e+00> : vector<16x64xf32>
    %17 = tpu.matmul %14, %16, %cst_18 {dimension_numbers = #tpu.dot_dimension_numbers<[1], [0], [0], [1], [0, 0, 1, 1], [], []>} : vector<16x48xf32>, vector<48x64xf32>, vector<16x64xf32> -> vector<16x64xf32>
    %18 = vector.broadcast %3 : vector<1x64xf32> to vector<16x64xf32>
    %19 = arith.addf %17, %18 : vector<16x64xf32>
    %20 = math.tanh %19 : vector<16x64xf32>
    %c0_19 = arith.constant 0 : index
    %c0_20 = arith.constant 0 : index
    %21 = vector.load %arg8[%c0_19, %c0_20] : memref<64x32xf32, #tpu.memory_space<vmem>>, vector<64x32xf32>
    %cst_21 = arith.constant dense<0.000000e+00> : vector<16x32xf32>
    %22 = tpu.matmul %20, %21, %cst_21 {dimension_numbers = #tpu.dot_dimension_numbers<[1], [0], [0], [1], [0, 0, 1, 1], [], []>} : vector<16x64xf32>, vector<64x32xf32>, vector<16x32xf32> -> vector<16x32xf32>
    %23 = vector.broadcast %4 : vector<1x32xf32> to vector<16x32xf32>
    %24 = arith.addf %22, %23 : vector<16x32xf32>
    %25 = math.tanh %24 : vector<16x32xf32>
    %c0_22 = arith.constant 0 : index
    %c0_23 = arith.constant 0 : index
    %26 = vector.load %arg11[%c0_22, %c0_23] : memref<16x32xf32, #tpu.memory_space<vmem>>, vector<16x32xf32>
    tpu.vector_store %arg11[%c0_22, %c0_23], %25 {strides = array<i32>} : memref<16x32xf32, #tpu.memory_space<vmem>>, vector<16x32xf32>,
    return
  }
  func.func @transform_0(%arg0: i32) -> (i32, i32) {
    %c0_i32 = arith.constant 0 : i32
    %c0_i32_0 = arith.constant 0 : i32
    return %arg0, %c0_i32 : i32, i32
  }
  func.func @transform_1(%arg0: i32) -> (i32, i32) {
    %c0_i32 = arith.constant 0 : i32
    %c0_i32_0 = arith.constant 0 : i32
    %c0_i32_1 = arith.constant 0 : i32
    return %c0_i32, %c0_i32_0 : i32, i32
  }
  func.func @transform_2(%arg0: i32) -> (i32, i32) {
    %c0_i32 = arith.constant 0 : i32
    %c0_i32_0 = arith.constant 0 : i32
    %c0_i32_1 = arith.constant 0 : i32
    return %c0_i32, %c0_i32_0 : i32, i32
  }
  func.func @transform_3(%arg0: i32) -> (i32, i32) {
    %c0_i32 = arith.constant 0 : i32
    %c0_i32_0 = arith.constant 0 : i32
    %c0_i32_1 = arith.constant 0 : i32
    return %c0_i32, %c0_i32_0 : i32, i32
  }
  func.func @transform_4(%arg0: i32) -> (i32, i32) {
    %c0_i32 = arith.constant 0 : i32
    %c0_i32_0 = arith.constant 0 : i32
    %c0_i32_1 = arith.constant 0 : i32
    return %c0_i32, %c0_i32_0 : i32, i32
  }
  func.func @transform_5(%arg0: i32) -> (i32, i32) {
    %c0_i32 = arith.constant 0 : i32
    %c0_i32_0 = arith.constant 0 : i32
    %c0_i32_1 = arith.constant 0 : i32
    return %c0_i32, %c0_i32_0 : i32, i32
  }
  func.func @transform_6(%arg0: i32) -> (i32, i32) {
    %c0_i32 = arith.constant 0 : i32
    %c0_i32_0 = arith.constant 0 : i32
    %c0_i32_1 = arith.constant 0 : i32
    return %c0_i32, %c0_i32_0 : i32, i32
  }
  func.func @transform_7(%arg0: i32) -> (i32, i32) {
    %c0_i32 = arith.constant 0 : i32
    %c0_i32_0 = arith.constant 0 : i32
    %c0_i32_1 = arith.constant 0 : i32
    return %c0_i32, %c0_i32_0 : i32, i32
  }
  func.func @transform_8(%arg0: i32) -> (i32, i32) {
    %c0_i32 = arith.constant 0 : i32
    %c0_i32_0 = arith.constant 0 : i32
    %c0_i32_1 = arith.constant 0 : i32
    return %c0_i32, %c0_i32_0 : i32, i32
  }
  func.func @transform_9(%arg0: i32) -> (i32, i32) {
    %c0_i32 = arith.constant 0 : i32
    %c0_i32_0 = arith.constant 0 : i32
    return %arg0, %c0_i32 : i32, i32
  }
  func.func @transform_10(%arg0: i32) -> (i32, i32) {
    %c0_i32 = arith.constant 0 : i32
    %c0_i32_0 = arith.constant 0 : i32
    return %arg0, %c0_i32 : i32, i32
  }
}

</mosaic_0001>

<llo_original>
// kernel: tpu_custom_call.1
$region0: #{tpu_custom_call.1}
  #allocation0 [shape = 'u32[]', space=smem, size = 0x4, offset = 0x4, fixed_abs, tag = 'smem constant byte address 0x4 - core index']
  #allocation1 [shape = 'u32[144,128]{1,0:T(1,128)}', space=vmem, size = 0x12000, scoped, tag = 'internal scratch']
  %s0 = inlined_call_operand.vmem [shape: f32[16,32], index: 0, kind: input, shape index: {}]
  %s1 = inlined_call_operand.vmem [shape: f32[32,64], index: 1, kind: input, shape index: {}]
  %s2 = inlined_call_operand.vmem [shape: f32[1,64], index: 2, kind: input, shape index: {}]
  %s3 = inlined_call_operand.vmem [shape: f32[64,48], index: 3, kind: input, shape index: {}]
  %s4 = inlined_call_operand.vmem [shape: f32[1,48], index: 4, kind: input, shape index: {}]
  %s5 = inlined_call_operand.vmem [shape: f32[48,64], index: 5, kind: input, shape index: {}]
  %s6 = inlined_call_operand.vmem [shape: f32[1,64], index: 6, kind: input, shape index: {}]
  %s7 = inlined_call_operand.vmem [shape: f32[64,32], index: 7, kind: input, shape index: {}]
  %s8 = inlined_call_operand.vmem [shape: f32[1,32], index: 8, kind: input, shape index: {}]
  %s9 = inlined_call_operand.hbm [shape: f32[16,48], index: 9, kind: output, shape index: {0}]
  %s10 = inlined_call_operand.hbm [shape: f32[16,32], index: 10, kind: output, shape index: {1}]
  %11 = xla_tuple %s9, %s10
  %s12 = sld [smem:[#allocation0]]
  $region54: #{tpu_custom_call.1} parent=0
    _
  %s14 = ssub.s32 1, %s12
  %s15 = scalar_select 0, %s14, %s12
  $region1: #{tpu_custom_call.1} parent=0
    #allocation2 [shape = 'u8[8192]{0}', space=vmem, size = 0x2000, scoped, tag = 'output window, operand 0, single buffered']
    #allocation3 [shape = 's32[1]{0}', space=sflag, size = 0x4, scoped, tag = 'scoped memory for tpu_custom_call.1']
    #allocation4 [shape = 'u8[8192]{0}', space=vmem, size = 0x2000, scoped, tag = 'output window, operand 1, single buffered']
    #allocation5 [shape = 's32[1]{0}', space=sflag, size = 0x4, scoped, tag = 'scoped memory for tpu_custom_call.1']
    %16 = vsyncpa [#allocation3], 0
    %17 = vsyncpa [#allocation5], 0
    // Predicated region
    $region2: #{tpu_custom_call.1} parent=1 // pred_check
      _
    $region3: #{tpu_custom_call.1} parent=1 // pred_check_branch
      %19 = sbr.rel (0) target = $region5
    $region4: #{tpu_custom_call.1} parent=1 // pred_region
      _
    $region5: #{tpu_custom_call.1} parent=1 // pred_fallthru
      _
    // Predicated region
    $region6: #{tpu_custom_call.1} parent=1 // pred_check
      _
    $region7: #{tpu_custom_call.1} parent=1 // pred_check_branch
      %21 = sbr.rel (0) target = $region9
    $region8: #{tpu_custom_call.1} parent=1 // pred_region
      _
    $region9: #{tpu_custom_call.1} parent=1 // pred_fallthru
      _
    // Predicated region
    $region10: #{tpu_custom_call.1} parent=1 // pred_check
      _
    $region11: #{tpu_custom_call.1} parent=1 // pred_check_branch
      %23 = sbr.rel (0) target = $region13
    $region12: #{tpu_custom_call.1} parent=1 // pred_region
      _
    $region13: #{tpu_custom_call.1} parent=1 // pred_fallthru
      _
    // Predicated region
    $region14: #{tpu_custom_call.1} parent=1 // pred_check
      _
    $region15: #{tpu_custom_call.1} parent=1 // pred_check_branch
      %25 = sbr.rel (0) target = $region17
    $region16: #{tpu_custom_call.1} parent=1 // pred_region
      _
    $region17: #{tpu_custom_call.1} parent=1 // pred_fallthru
      _
    // Predicated region
    $region18: #{tpu_custom_call.1} parent=1 // pred_check
      _
    $region19: #{tpu_custom_call.1} parent=1 // pred_check_branch
      %27 = sbr.rel (0) target = $region21
    $region20: #{tpu_custom_call.1} parent=1 // pred_region
      _
    $region21: #{tpu_custom_call.1} parent=1 // pred_fallthru
      _
    // Predicated region
    $region22: #{tpu_custom_call.1} parent=1 // pred_check
      _
    $region23: #{tpu_custom_call.1} parent=1 // pred_check_branch
      %29 = sbr.rel (0) target = $region25
    $region24: #{tpu_custom_call.1} parent=1 // pred_region
      _
    $region25: #{tpu_custom_call.1} parent=1 // pred_fallthru
      _
    // Predicated region
    $region26: #{tpu_custom_call.1} parent=1 // pred_check
      _
    $region27: #{tpu_custom_call.1} parent=1 // pred_check_branch
      %31 = sbr.rel (0) target = $region29
    $region28: #{tpu_custom_call.1} parent=1 // pred_region
      _
    $region29: #{tpu_custom_call.1} parent=1 // pred_fallthru
      _
    // Predicated region
    $region30: #{tpu_custom_call.1} parent=1 // pred_check
      _
    $region31: #{tpu_custom_call.1} parent=1 // pred_check_branch
      %33 = sbr.rel (0) target = $region33
    $region32: #{tpu_custom_call.1} parent=1 // pred_region
      _
    $region33: #{tpu_custom_call.1} parent=1 // pred_fallthru
      _
    // Predicated region
    $region34: #{tpu_custom_call.1} parent=1 // pred_check
      _
    $region35: #{tpu_custom_call.1} parent=1 // pred_check_branch
      %35 = sbr.rel (0) target = $region37
    $region36: #{tpu_custom_call.1} parent=1 // pred_region
      _
    $region37: #{tpu_custom_call.1} parent=1 // pred_fallthru
      _
    %v36 = vld [vmem:[%s0] sm:$0xff]
    %v37 = vld [vmem:[%s0 + $0x8] sm:$0xff]
    %v38 = vld [vmem:[%s2] sm:$0x1]
    %v39 = vld [vmem:[%s4] sm:$0x1]
    %v40 = vld [vmem:[%s6] sm:$0x1]
    %v41 = vld [vmem:[%s8] sm:$0x1]
    %v42 = vld [vmem:[%s1] sm:$0xff]
    %v43 = vld [vmem:[%s1 + $0x8] sm:$0xff]
    %v44 = vld [vmem:[%s1 + $0x10] sm:$0xff]
    %v45 = vld [vmem:[%s1 + $0x18] sm:$0xff]
    %v47 = vlaneseq
    %v48 = vshrl.u32 %v47, 7
    %v49 = vsub.s32 0, %v48
    %v50 = vrot.slane %v38, %v49
    %vm52 = vcmask 261120
    %v54 = vsel %vm52, %v36, 0
    %v57 = vsel %vm52, %v37, 0
    %59 = vmatprep.subr.mxu0 0.0
    %60 = vmatpush1.msra.mxu0 %v42
    %61 = vmatprep.subr.mxu0 0.0
    %62 = vmatpush1.msra.mxu0 %v43
    %63 = vmatprep.subr.mxu0 0.0
    %64 = vmatpush1.msra.mxu0 %v44
    %65 = vmatprep.subr.mxu0 0.0
    %66 = vmatpush1.msra.mxu0 %v45
    %67 = vmatprep.subr.mxu0 0.0
    %68 = vmatpush1.msra.mxu0 0.0
    %69 = vmatprep.subr.mxu0 0.0
    %70 = vmatpush1.msra.mxu0 0.0
    %71 = vmatprep.subr.mxu0 0.0
    %72 = vmatpush1.msra.mxu0 0.0
    %73 = vmatprep.subr.mxu0 0.0
    %74 = vmatpush1.msra.mxu0 0.0
    %75 = vmatprep.subr.mxu0 0.0
    %76 = vmatpush1.msra.mxu0 0.0
    %77 = vmatprep.subr.mxu0 0.0
    %78 = vmatpush1.msra.mxu0 0.0
    %79 = vmatprep.subr.mxu0 0.0
    %80 = vmatpush1.msra.mxu0 0.0
    %81 = vmatprep.subr.mxu0 0.0
    %82 = vmatpush1.msra.mxu0 0.0
    %83 = vmatprep.subr.mxu0 0.0
    %84 = vmatpush1.msra.mxu0 0.0
    %85 = vmatprep.subr.mxu0 0.0
    %86 = vmatpush1.msra.mxu0 0.0
    %87 = vmatprep.subr.mxu0 0.0
    %88 = vmatpush1.msra.mxu0 0.0
    %89 = vmatprep.subr.mxu0 0.0
    %90 = vmatpush1.msra.mxu0 0.0
    %91 = vmatprep.subr.mxu0 0.0
    %92 = vmatpush1.msra.mxu0 0.0
    %93 = vmatprep.subr.mxu0 0.0
    %94 = vmatpush1.msra.mxu0 0.0
    %95 = vmatprep.subr.mxu0 0.0
    %96 = vmatpush1.msra.mxu0 0.0
    %97 = vmatprep.subr.mxu0 0.0
    %98 = vmatpush1.msra.mxu0 0.0
    %99 = vmatprep.subr.mxu0 0.0
    %100 = vmatpush1.msra.mxu0 0.0
    %101 = vmatprep.subr.mxu0 0.0
    %102 = vmatpush1.msra.mxu0 0.0
    %103 = vmatprep.subr.mxu0 0.0
    %104 = vmatpush1.msra.mxu0 0.0
    %105 = vmatprep.subr.mxu0 0.0
    %106 = vmatpush1.msra.mxu0 0.0
    %107 = vmatprep.subr.mxu0 0.0
    %108 = vmatpush1.msra.mxu0 0.0
    %109 = vmatprep.subr.mxu0 0.0
    %110 = vmatpush1.msra.mxu0 0.0
    %111 = vmatprep.subr.mxu0 0.0
    %112 = vmatpush1.msra.mxu0 0.0
    %113 = vmatprep.subr.mxu0 0.0
    %114 = vmatpush1.msra.mxu0 0.0
    %115 = vmatprep.subr.mxu0 0.0
    %116 = vmatpush1.msra.mxu0 0.0
    %117 = vmatprep.subr.mxu0 0.0
    %118 = vmatpush1.msra.mxu0 0.0
    %119 = vmatprep.subr.mxu0 0.0
    %120 = vmatpush1.msra.mxu0 0.0
    %121 = vmatprep.subr.mxu0 0.0
    %122 = vmatpush1.msra.mxu0 0.0
    %123 = vmatprep.mubr.f32.mxu0 0.0
    %124 = vmatmul.mubr.f32.gmra.mrb[0].mxu0 %v54
    %v125 = vpop.f32.mrb[0].mxu0
    %v126 = vadd.f32 %v50, %v125
    %v127 = vpop.f32.mrb[0].mxu0
    %128 = vmatprep.mubr.f32.mxu0 0.0
    %129 = vmatmul.mubr.f32.gmra.mrb[0].mxu0 %v57
    %v130 = vpop.f32.mrb[0].mxu0
    %v131 = vadd.f32 %v50, %v130
    %v132 = vpop.f32.mrb[0].mxu0
    %133 = vdwg.mxu0
    %v134 = vtanh.pop %v126
    %v135 = vtanh.pop %v131
    %v136 = vld [vmem:[%s3] sm:$0xff]
    %v137 = vld [vmem:[%s3 + $0x8] sm:$0xff]
    %v138 = vld [vmem:[%s3 + $0x10] sm:$0xff]
    %v139 = vld [vmem:[%s3 + $0x18] sm:$0xff]
    %v140 = vld [vmem:[%s3 + $0x20] sm:$0xff]
    %v141 = vld [vmem:[%s3 + $0x28] sm:$0xff]
    %v142 = vld [vmem:[%s3 + $0x30] sm:$0xff]
    %v143 = vld [vmem:[%s3 + $0x38] sm:$0xff]
    %v145 = vlaneseq
    %v146 = vshrl.u32 %v145, 7
    %v147 = vsub.s32 0, %v146
    %v148 = vrot.slane %v39, %v147
    %vm150 = vcmask 523264
    %v152 = vsel %vm150, %v134, 0
    %v155 = vsel %vm150, %v135, 0
    %157 = vmatprep.subr.mxu0 0.0
    %158 = vmatpush1.msra.mxu0 %v136
    %159 = vmatprep.subr.mxu0 0.0
    %160 = vmatpush1.msra.mxu0 %v137
    %161 = vmatprep.subr.mxu0 0.0
    %162 = vmatpush1.msra.mxu0 %v138
    %163 = vmatprep.subr.mxu0 0.0
    %164 = vmatpush1.msra.mxu0 %v139
    %165 = vmatprep.subr.mxu0 0.0
    %166 = vmatpush1.msra.mxu0 %v140
    %167 = vmatprep.subr.mxu0 0.0
    %168 = vmatpush1.msra.mxu0 %v141
    %169 = vmatprep.subr.mxu0 0.0
    %170 = vmatpush1.msra.mxu0 %v142
    %171 = vmatprep.subr.mxu0 0.0
    %172 = vmatpush1.msra.mxu0 %v143
    %173 = vmatprep.subr.mxu0 0.0
    %174 = vmatpush1.msra.mxu0 0.0
    %175 = vmatprep.subr.mxu0 0.0
    %176 = vmatpush1.msra.mxu0 0.0
    %177 = vmatprep.subr.mxu0 0.0
    %178 = vmatpush1.msra.mxu0 0.0
    %179 = vmatprep.subr.mxu0 0.0
    %180 = vmatpush1.msra.mxu0 0.0
    %181 = vmatprep.subr.mxu0 0.0
    %182 = vmatpush1.msra.mxu0 0.0
    %183 = vmatprep.subr.mxu0 0.0
    %184 = vmatpush1.msra.mxu0 0.0
    %185 = vmatprep.subr.mxu0 0.0
    %186 = vmatpush1.msra.mxu0 0.0
    %187 = vmatprep.subr.mxu0 0.0
    %188 = vmatpush1.msra.mxu0 0.0
    %189 = vmatprep.subr.mxu0 0.0
    %190 = vmatpush1.msra.mxu0 0.0
    %191 = vmatprep.subr.mxu0 0.0
    %192 = vmatpush1.msra.mxu0 0.0
    %193 = vmatprep.subr.mxu0 0.0
    %194 = vmatpush1.msra.mxu0 0.0
    %195 = vmatprep.subr.mxu0 0.0
    %196 = vmatpush1.msra.mxu0 0.0
    %197 = vmatprep.subr.mxu0 0.0
    %198 = vmatpush1.msra.mxu0 0.0
    %199 = vmatprep.subr.mxu0 0.0
    %200 = vmatpush1.msra.mxu0 0.0
    %201 = vmatprep.subr.mxu0 0.0
    %202 = vmatpush1.msra.mxu0 0.0
    %203 = vmatprep.subr.mxu0 0.0
    %204 = vmatpush1.msra.mxu0 0.0
    %205 = vmatprep.subr.mxu0 0.0
    %206 = vmatpush1.msra.mxu0 0.0
    %207 = vmatprep.subr.mxu0 0.0
    %208 = vmatpush1.msra.mxu0 0.0
    %209 = vmatprep.subr.mxu0 0.0
    %210 = vmatpush1.msra.mxu0 0.0
    %211 = vmatprep.subr.mxu0 0.0
    %212 = vmatpush1.msra.mxu0 0.0
    %213 = vmatprep.subr.mxu0 0.0
    %214 = vmatpush1.msra.mxu0 0.0
    %215 = vmatprep.subr.mxu0 0.0
    %216 = vmatpush1.msra.mxu0 0.0
    %217 = vmatprep.subr.mxu0 0.0
    %218 = vmatpush1.msra.mxu0 0.0
    %219 = vmatprep.subr.mxu0 0.0
    %220 = vmatpush1.msra.mxu0 0.0
    %221 = vmatprep.mubr.f32.mxu0 0.0
    %222 = vmatmul.mubr.f32.gmra.mrb[0].mxu0 %v152
    %v223 = vpop.f32.mrb[0].mxu0
    %v224 = vadd.f32 %v148, %v223
    %v225 = vpop.f32.mrb[0].mxu0
    %226 = vmatprep.mubr.f32.mxu0 0.0
    %227 = vmatmul.mubr.f32.gmra.mrb[0].mxu0 %v155
    %v228 = vpop.f32.mrb[0].mxu0
    %v229 = vadd.f32 %v148, %v228
    %v230 = vpop.f32.mrb[0].mxu0
    %231 = vdwg.mxu0
    %v232 = vtanh.pop %v224
    %v233 = vtanh.pop %v229
    %vm234 = vcmask 392192
    %235 = vst.msk [vmem:[#allocation2] sm:$0xff] %vm234, %v232
    %236 = vst.msk [vmem:[#allocation2 + $0x8] sm:$0xff] %vm234, %v233
    %v237 = vld [vmem:[%s5] sm:$0xff]
    %v238 = vld [vmem:[%s5 + $0x8] sm:$0xff]
    %v239 = vld [vmem:[%s5 + $0x10] sm:$0xff]
    %v240 = vld [vmem:[%s5 + $0x18] sm:$0xff]
    %v241 = vld [vmem:[%s5 + $0x20] sm:$0xff]
    %v242 = vld [vmem:[%s5 + $0x28] sm:$0xff]
    %v244 = vlaneseq
    %v245 = vshrl.u32 %v244, 7
    %v246 = vsub.s32 0, %v245
    %v247 = vrot.slane %v40, %v246
    %v250 = vsel %vm234, %v232, 0
    %v253 = vsel %vm234, %v233, 0
    %255 = vmatprep.subr.mxu0 0.0
    %256 = vmatpush1.msra.mxu0 %v237
    %257 = vmatprep.subr.mxu0 0.0
    %258 = vmatpush1.msra.mxu0 %v238
    %259 = vmatprep.subr.mxu0 0.0
    %260 = vmatpush1.msra.mxu0 %v239
    %261 = vmatprep.subr.mxu0 0.0
    %262 = vmatpush1.msra.mxu0 %v240
    %263 = vmatprep.subr.mxu0 0.0
    %264 = vmatpush1.msra.mxu0 %v241
    %265 = vmatprep.subr.mxu0 0.0
    %266 = vmatpush1.msra.mxu0 %v242
    %267 = vmatprep.subr.mxu0 0.0
    %268 = vmatpush1.msra.mxu0 0.0
    %269 = vmatprep.subr.mxu0 0.0
    %270 = vmatpush1.msra.mxu0 0.0
    %271 = vmatprep.subr.mxu0 0.0
    %272 = vmatpush1.msra.mxu0 0.0
    %273 = vmatprep.subr.mxu0 0.0
    %274 = vmatpush1.msra.mxu0 0.0
    %275 = vmatprep.subr.mxu0 0.0
    %276 = vmatpush1.msra.mxu0 0.0
    %277 = vmatprep.subr.mxu0 0.0
    %278 = vmatpush1.msra.mxu0 0.0
    %279 = vmatprep.subr.mxu0 0.0
    %280 = vmatpush1.msra.mxu0 0.0
    %281 = vmatprep.subr.mxu0 0.0
    %282 = vmatpush1.msra.mxu0 0.0
    %283 = vmatprep.subr.mxu0 0.0
    %284 = vmatpush1.msra.mxu0 0.0
    %285 = vmatprep.subr.mxu0 0.0
    %286 = vmatpush1.msra.mxu0 0.0
    %287 = vmatprep.subr.mxu0 0.0
    %288 = vmatpush1.msra.mxu0 0.0
    %289 = vmatprep.subr.mxu0 0.0
    %290 = vmatpush1.msra.mxu0 0.0
    %291 = vmatprep.subr.mxu0 0.0
    %292 = vmatpush1.msra.mxu0 0.0
    %293 = vmatprep.subr.mxu0 0.0
    %294 = vmatpush1.msra.mxu0 0.0
    %295 = vmatprep.subr.mxu0 0.0
    %296 = vmatpush1.msra.mxu0 0.0
    %297 = vmatprep.subr.mxu0 0.0
    %298 = vmatpush1.msra.mxu0 0.0
    %299 = vmatprep.subr.mxu0 0.0
    %300 = vmatpush1.msra.mxu0 0.0
    %301 = vmatprep.subr.mxu0 0.0
    %302 = vmatpush1.msra.mxu0 0.0
    %303 = vmatprep.subr.mxu0 0.0
    %304 = vmatpush1.msra.mxu0 0.0
    %305 = vmatprep.subr.mxu0 0.0
    %306 = vmatpush1.msra.mxu0 0.0
    %307 = vmatprep.subr.mxu0 0.0
    %308 = vmatpush1.msra.mxu0 0.0
    %309 = vmatprep.subr.mxu0 0.0
    %310 = vmatpush1.msra.mxu0 0.0
    %311 = vmatprep.subr.mxu0 0.0
    %312 = vmatpush1.msra.mxu0 0.0
    %313 = vmatprep.subr.mxu0 0.0
    %314 = vmatpush1.msra.mxu0 0.0
    %315 = vmatprep.subr.mxu0 0.0
    %316 = vmatpush1.msra.mxu0 0.0
    %317 = vmatprep.subr.mxu0 0.0
    %318 = vmatpush1.msra.mxu0 0.0
    %319 = vmatprep.mubr.f32.mxu0 0.0
    %320 = vmatmul.mubr.f32.gmra.mrb[0].mxu0 %v250
    %v321 = vpop.f32.mrb[0].mxu0
    %v322 = vadd.f32 %v247, %v321
    %v323 = vpop.f32.mrb[0].mxu0
    %324 = vmatprep.mubr.f32.mxu0 0.0
    %325 = vmatmul.mubr.f32.gmra.mrb[0].mxu0 %v253
    %v326 = vpop.f32.mrb[0].mxu0
    %v327 = vadd.f32 %v247, %v326
    %v328 = vpop.f32.mrb[0].mxu0
    %329 = vdwg.mxu0
    %v330 = vtanh.pop %v322
    %v331 = vtanh.pop %v327
    %v332 = vld [vmem:[%s7] sm:$0xff]
    %v333 = vld [vmem:[%s7 + $0x8] sm:$0xff]
    %v334 = vld [vmem:[%s7 + $0x10] sm:$0xff]
    %v335 = vld [vmem:[%s7 + $0x18] sm:$0xff]
    %v336 = vld [vmem:[%s7 + $0x20] sm:$0xff]
    %v337 = vld [vmem:[%s7 + $0x28] sm:$0xff]
    %v338 = vld [vmem:[%s7 + $0x30] sm:$0xff]
    %v339 = vld [vmem:[%s7 + $0x38] sm:$0xff]
    %v341 = vlaneseq
    %v342 = vshrl.u32 %v341, 7
    %v343 = vsub.s32 0, %v342
    %v344 = vrot.slane %v41, %v343
    %v347 = vsel %vm150, %v330, 0
    %v350 = vsel %vm150, %v331, 0
    %352 = vmatprep.subr.mxu0 0.0
    %353 = vmatpush1.msra.mxu0 %v332
    %354 = vmatprep.subr.mxu0 0.0
    %355 = vmatpush1.msra.mxu0 %v333
    %356 = vmatprep.subr.mxu0 0.0
    %357 = vmatpush1.msra.mxu0 %v334
    %358 = vmatprep.subr.mxu0 0.0
    %359 = vmatpush1.msra.mxu0 %v335
    %360 = vmatprep.subr.mxu0 0.0
    %361 = vmatpush1.msra.mxu0 %v336
    %362 = vmatprep.subr.mxu0 0.0
    %363 = vmatpush1.msra.mxu0 %v337
    %364 = vmatprep.subr.mxu0 0.0
    %365 = vmatpush1.msra.mxu0 %v338
    %366 = vmatprep.subr.mxu0 0.0
    %367 = vmatpush1.msra.mxu0 %v339
    %368 = vmatprep.subr.mxu0 0.0
    %369 = vmatpush1.msra.mxu0 0.0
    %370 = vmatprep.subr.mxu0 0.0
    %371 = vmatpush1.msra.mxu0 0.0
    %372 = vmatprep.subr.mxu0 0.0
    %373 = vmatpush1.msra.mxu0 0.0
    %374 = vmatprep.subr.mxu0 0.0
    %375 = vmatpush1.msra.mxu0 0.0
    %376 = vmatprep.subr.mxu0 0.0
    %377 = vmatpush1.msra.mxu0 0.0
    %378 = vmatprep.subr.mxu0 0.0
    %379 = vmatpush1.msra.mxu0 0.0
    %380 = vmatprep.subr.mxu0 0.0
    %381 = vmatpush1.msra.mxu0 0.0
    %382 = vmatprep.subr.mxu0 0.0
    %383 = vmatpush1.msra.mxu0 0.0
    %384 = vmatprep.subr.mxu0 0.0
    %385 = vmatpush1.msra.mxu0 0.0
    %386 = vmatprep.subr.mxu0 0.0
    %387 = vmatpush1.msra.mxu0 0.0
    %388 = vmatprep.subr.mxu0 0.0
    %389 = vmatpush1.msra.mxu0 0.0
    %390 = vmatprep.subr.mxu0 0.0
    %391 = vmatpush1.msra.mxu0 0.0
    %392 = vmatprep.subr.mxu0 0.0
    %393 = vmatpush1.msra.mxu0 0.0
    %394 = vmatprep.subr.mxu0 0.0
    %395 = vmatpush1.msra.mxu0 0.0
    %396 = vmatprep.subr.mxu0 0.0
    %397 = vmatpush1.msra.mxu0 0.0
    %398 = vmatprep.subr.mxu0 0.0
    %399 = vmatpush1.msra.mxu0 0.0
    %400 = vmatprep.subr.mxu0 0.0
    %401 = vmatpush1.msra.mxu0 0.0
    %402 = vmatprep.subr.mxu0 0.0
    %403 = vmatpush1.msra.mxu0 0.0
    %404 = vmatprep.subr.mxu0 0.0
    %405 = vmatpush1.msra.mxu0 0.0
    %406 = vmatprep.subr.mxu0 0.0
    %407 = vmatpush1.msra.mxu0 0.0
    %408 = vmatprep.subr.mxu0 0.0
    %409 = vmatpush1.msra.mxu0 0.0
    %410 = vmatprep.subr.mxu0 0.0
    %411 = vmatpush1.msra.mxu0 0.0
    %412 = vmatprep.subr.mxu0 0.0
    %413 = vmatpush1.msra.mxu0 0.0
    %414 = vmatprep.subr.mxu0 0.0
    %415 = vmatpush1.msra.mxu0 0.0
    %416 = vmatprep.mubr.f32.mxu0 0.0
    %417 = vmatmul.mubr.f32.gmra.mrb[0].mxu0 %v347
    %v418 = vpop.f32.mrb[0].mxu0
    %v419 = vadd.f32 %v344, %v418
    %v420 = vpop.f32.mrb[0].mxu0
    %421 = vmatprep.mubr.f32.mxu0 0.0
    %422 = vmatmul.mubr.f32.gmra.mrb[0].mxu0 %v350
    %v423 = vpop.f32.mrb[0].mxu0
    %v424 = vadd.f32 %v344, %v423
    %v425 = vpop.f32.mrb[0].mxu0
    %426 = vdwg.mxu0
    %v427 = vtanh.pop %v419
    %v428 = vtanh.pop %v424
    %429 = vst.msk [vmem:[#allocation4] sm:$0xff] %vm52, %v427
    %430 = vst.msk [vmem:[#allocation4 + $0x8] sm:$0xff] %vm52, %v428
    // Predicated region
    $region38: #{tpu_custom_call.1} parent=1 // pred_check
      _
    $region39: #{tpu_custom_call.1} parent=1 // pred_check_branch
      %432 = sbr.rel (0) target = $region41
    $region40: #{tpu_custom_call.1} parent=1 // pred_region
      %s434 = ssub.s32 256, 256
      %435 = vsyncadd [#allocation3], %s434
      %s436 = sshll.u32 [#allocation2], 4
      %s437 = int_to_ptr.vmem [resolvable:$true] %s436
      %442 = dma.vmem_to_hbm [thread:$0]  %s437, 256, %s9, [#allocation3], 128, 128, 8
    $region41: #{tpu_custom_call.1} parent=1 // pred_fallthru
      _
    // Predicated region
    $region42: #{tpu_custom_call.1} parent=1 // pred_check
      _
    $region43: #{tpu_custom_call.1} parent=1 // pred_check_branch
      %444 = sbr.rel (0) target = $region45
    $region44: #{tpu_custom_call.1} parent=1 // pred_region
      %s446 = ssub.s32 256, 256
      %447 = vsyncadd [#allocation5], %s446
      %s448 = sshll.u32 [#allocation4], 4
      %s449 = int_to_ptr.vmem [resolvable:$true] %s448
      %454 = dma.vmem_to_hbm [thread:$0]  %s449, 256, %s10, [#allocation5], 128, 128, 8
    $region45: #{tpu_custom_call.1} parent=1 // pred_fallthru
      _
    // Predicated region
    $region46: #{tpu_custom_call.1} parent=1 // pred_check
      _
    $region47: #{tpu_custom_call.1} parent=1 // pred_check_branch
      %456 = sbr.rel (0) target = $region49
    $region48: #{tpu_custom_call.1} parent=1 // pred_region
      %457 = dma.done [#allocation3], 256
    $region49: #{tpu_custom_call.1} parent=1 // pred_fallthru
      _
    // Predicated region
    $region50: #{tpu_custom_call.1} parent=1 // pred_check
      _
    $region51: #{tpu_custom_call.1} parent=1 // pred_check_branch
      %459 = sbr.rel (0) target = $region53
    $region52: #{tpu_custom_call.1} parent=1 // pred_region
      %460 = dma.done [#allocation5], 256
    $region53: #{tpu_custom_call.1} parent=1 // pred_fallthru
      _
    %461 = vsyncpa [#allocation3], 1
    %462 = vsyncpa [#allocation5], 1

</llo_original>
